<compile_context>
chip_gen: v5e
topology: v5e:2x2
jax: 0.10.0
libtpu: 0.0.40
codegen_flags: <defaults>
</compile_context>

<pallas_src>
import jax
import jax.numpy as jnp
from jax.experimental import pallas as pl
from jax.experimental.pallas import tpu as pltpu

_EPS = 1e-12            # F.normalize default eps
_EPS_SQ = _EPS * _EPS   # clamp on the sum-of-squares (== clamp on the norm)


def _round_up(x: int, m: int) -> int:
    return (x + m - 1) // m * m


def _kernel_single_k(x_ref, w_ref, inv_row_ref, inv_col_ref, o_ref):
    """Whole contraction in one MXU step; fused per-row/per-col scale."""
    acc = jnp.dot(x_ref[...], w_ref[...], preferred_element_type=jnp.float32)
    o_ref[...] = (acc * inv_row_ref[...] * inv_col_ref[...]).astype(o_ref.dtype)


def _kernel_multi_k(x_ref, w_ref, inv_row_ref, inv_col_ref, o_ref, acc_ref):
    """Grid axes: (j over out tiles, i over row tiles, k over K tiles)."""
    k = pl.program_id(2)

    @pl.when(k == 0)
    def _init():
        acc_ref[...] = jnp.zeros_like(acc_ref)

    acc_ref[...] += jnp.dot(x_ref[...], w_ref[...],
                            preferred_element_type=jnp.float32)

    @pl.when(k == pl.num_programs(2) - 1)
    def _epilogue():
        o_ref[...] = (acc_ref[...] * inv_row_ref[...]
                      * inv_col_ref[...]).astype(o_ref.dtype)


def normed_linear(x: jax.Array, weight: jax.Array) -> jax.Array:
    """out = normalize(x, dim=1) @ normalize(weight, dim=0)."""
    n, kf = x.shape
    kf_w, of = weight.shape
    assert kf == kf_w, "in_features mismatch"

    itemsize = jnp.dtype(x.dtype).itemsize

    # ---- Tile selection -------------------------------------------------
    # Rows: sublane multiple; out features: lane-dense; both capped at 512
    # (two native 256x256 MXU tiles per dim on v6e/v7x, 128-multiples for v5e).
    tm = min(512, _round_up(n, 8))
    tn = min(512, _round_up(of, 128))
    # Contraction: collapse to a single K tile whenever it fits (W read once,
    # no accumulator round-trips); otherwise split into ~equal 128-multiples.
    tk_cap = 2048 if itemsize <= 2 else 1024
    kf_128 = _round_up(kf, 128)
    if kf_128 <= tk_cap:
        tk = kf_128
    else:
        nk = -(-kf_128 // tk_cap)
        tk = _round_up(-(-kf_128 // nk), 128)

    n_p = _round_up(n, tm)
    of_p = _round_up(of, tn)
    kf_p = _round_up(kf, tk)

    num_i = n_p // tm
    num_j = of_p // tn
    num_k = kf_p // tk

    # ---- Padding (neutral: zero rows/cols produce exactly-zero outputs) ---
    x_p = jnp.pad(x, ((0, n_p - n), (0, kf_p - kf)))
    w_p = jnp.pad(weight, ((0, kf_p - kf), (0, of_p - of)))

    # ---- Inverse norms, computed once wrapper-side from UNPADDED operands --
    # scale = 1 / max(norm, eps)  ==  rsqrt(max(sumsq, eps^2))
    xf = x.astype(jnp.float32)
    inv_row = jax.lax.rsqrt(
        jnp.maximum(jnp.sum(xf * xf, axis=1, keepdims=True), _EPS_SQ))
    wf = weight.astype(jnp.float32)
    inv_col = jax.lax.rsqrt(
        jnp.maximum(jnp.sum(wf * wf, axis=0, keepdims=True), _EPS_SQ))
    inv_row = jnp.pad(inv_row, ((0, n_p - n), (0, 0)))   # (n_p, 1) f32
    inv_col = jnp.pad(inv_col, ((0, 0), (0, of_p - of)))  # (1, of_p) f32

    # ---- VMEM budget (double-buffered inputs/outputs + scratch) ----------
    vmem_est = (2 * tm * tk * itemsize            # x tiles
                + 2 * tk * tn * itemsize          # W tiles
                + 2 * tm * tn * itemsize          # out tiles
                + 2 * tm * 128 * 4                # inv_row (lane-padded)
                + 2 * 8 * tn * 4                  # inv_col (sublane-padded)
                + (tm * tn * 4 if num_k > 1 else 0))  # f32 accumulator
    # Raise above the 16 MiB v5e scoped default, stay well under v7x's
    # 64 MiB physical VMEM.
    vmem_limit = int(min(max(1.5 * vmem_est, 24 << 20), 60 << 20))

    # ---- Grid / specs ------------------------------------------------------
    x_bytes = x_p.size * itemsize
    w_bytes = w_p.size * itemsize
    out_bytes = n_p * of_p * itemsize

    if num_k == 1:
        # Fast path: K collapsed, W streamed from HBM exactly once and held
        # resident across the inner row loop; no scratch, no pl.when.
        grid = (num_j, num_i)
        kernel = _kernel_single_k
        in_specs = [
            pl.BlockSpec((tm, tk), lambda j, i: (i, 0)),   # x tile
            pl.BlockSpec((tk, tn), lambda j, i: (0, j)),   # W tile (i-invariant)
            pl.BlockSpec((tm, 1), lambda j, i: (i, 0)),    # inv row norm
            pl.BlockSpec((1, tn), lambda j, i: (0, j)),    # inv col norm
        ]
        out_specs = pl.BlockSpec((tm, tn), lambda j, i: (i, j))
        scratch_shapes = []
        dim_sem = ("parallel", "parallel")
        bytes_accessed = x_bytes * num_j + w_bytes + out_bytes
    else:
        grid = (num_j, num_i, num_k)
        kernel = _kernel_multi_k
        in_specs = [
            pl.BlockSpec((tm, tk), lambda j, i, k: (i, k)),
            pl.BlockSpec((tk, tn), lambda j, i, k: (k, j)),
            pl.BlockSpec((tm, 1), lambda j, i, k: (i, 0)),
            pl.BlockSpec((1, tn), lambda j, i, k: (0, j)),
        ]
        out_specs = pl.BlockSpec((tm, tn), lambda j, i, k: (i, j))
        scratch_shapes = [pltpu.VMEM((tm, tn), jnp.float32)]
        dim_sem = ("parallel", "parallel", "arbitrary")
        bytes_accessed = x_bytes * num_j + w_bytes * num_i + out_bytes

    cost = pl.CostEstimate(
        flops=2 * n * kf * of,
        transcendentals=0,
        bytes_accessed=int(bytes_accessed),
    )

    out_p = pl.pallas_call(
        kernel,
        out_shape=jax.ShapeDtypeStruct((n_p, of_p), x.dtype),
        grid=grid,
        in_specs=in_specs,
        out_specs=out_specs,
        scratch_shapes=scratch_shapes,
        compiler_params=pltpu.CompilerParams(
            dimension_semantics=dim_sem,
            vmem_limit_bytes=vmem_limit,
        ),
        cost_estimate=cost,
    )(x_p, w_p, inv_row, inv_col)

    return out_p[:n, :of]


def init_normed_linear_weight(key, in_features, out_features):
    """Deterministic replica of:
       weight.uniform_(-1, 1).renorm_(2, 1, 1e-5).mul_(1e5)
    i.e. uniform init, then each column (dim-1 slice) rescaled to L2 norm ~1."""
    w = jax.random.uniform(key, (in_features, out_features),
                           dtype=jnp.float32, minval=-1.0, maxval=1.0)
    col_norm = jnp.sqrt(jnp.sum(w * w, axis=0, keepdims=True))
    maxnorm = 1e-5
    scale = jnp.where(col_norm > maxnorm, maxnorm / (col_norm + 1e-7), 1.0)
    return w * scale * 1e5


def normed_linear_ref(x, weight):
    """Pure-JAX reference for correctness check."""
    xn = x / jnp.maximum(jnp.linalg.norm(x, axis=1, keepdims=True), _EPS)
    wn = weight / jnp.maximum(jnp.linalg.norm(weight, axis=0, keepdims=True), _EPS)
    return xn @ wn


if __name__ == "__main__":
    key = jax.random.PRNGKey(0)
    k_x, k_w = jax.random.split(key)

    batch = 8
    in_features = 32
    out_features = 16

    x = jax.random.normal(k_x, (batch, in_features), dtype=jnp.float32)
    weight = init_normed_linear_weight(k_w, in_features, out_features)

    out = normed_linear(x, weight)
    out = jax.block_until_ready(out)

    ref = normed_linear_ref(x, weight)
    assert out.shape == (batch, out_features)
    # Tolerance allows for MXU rounding of the hoisted-normalization order
    # (matmul in native dtype, scale after) vs normalize-then-matmul.
    assert jnp.allclose(out, ref, atol=1e-4, rtol=1e-4), "mismatch vs reference"

    print("KERNEL_OK")
</pallas_src>

<mosaic_0001>
module attributes {stable_mosaic.version = 11 : i64} {
  func.func @_kernel_single_k(%arg0: i32, %arg1: i32, %arg2: memref<8x128xf32, #tpu.memory_space<vmem>>, %arg3: memref<128x128xf32, #tpu.memory_space<vmem>>, %arg4: memref<8x1xf32, #tpu.memory_space<vmem>>, %arg5: memref<1x128xf32, #tpu.memory_space<vmem>>, %arg6: memref<8x128xf32, #tpu.memory_space<vmem>>) attributes {dimension_semantics = [#tpu.dimension_semantics<parallel>, #tpu.dimension_semantics<parallel>], iteration_bounds = array<i64: 1, 1>, scalar_prefetch = 0 : i64, scratch_operands = 0 : i64, tpu.core_type = #tpu.core_type<tc>, window_params = [{transform_indices = @transform_0, window_bounds = array<i64: 8, 128>}, {transform_indices = @transform_1, window_bounds = array<i64: 128, 128>}, {transform_indices = @transform_2, window_bounds = array<i64: 8, 1>}, {transform_indices = @transform_3, window_bounds = array<i64: 1, 128>}, {transform_indices = @transform_4, window_bounds = array<i64: 8, 128>}]} {
    %c0 = arith.constant 0 : index
    %c0_0 = arith.constant 0 : index
    %0 = vector.load %arg2[%c0, %c0_0] : memref<8x128xf32, #tpu.memory_space<vmem>>, vector<8x128xf32>
    %c0_1 = arith.constant 0 : index
    %c0_2 = arith.constant 0 : index
    %1 = vector.load %arg3[%c0_1, %c0_2] : memref<128x128xf32, #tpu.memory_space<vmem>>, vector<128x128xf32>
    %cst = arith.constant dense<0.000000e+00> : vector<8x128xf32>
    %2 = tpu.matmul %0, %1, %cst {dimension_numbers = #tpu.dot_dimension_numbers<[1], [0], [0], [1], [0, 0, 1, 1], [], []>} : vector<8x128xf32>, vector<128x128xf32>, vector<8x128xf32> -> vector<8x128xf32>
    %c0_3 = arith.constant 0 : index
    %c0_4 = arith.constant 0 : index
    %3 = vector.load %arg4[%c0_3, %c0_4] : memref<8x1xf32, #tpu.memory_space<vmem>>, vector<8x1xf32>
    %4 = vector.broadcast %3 : vector<8x1xf32> to vector<8x128xf32>
    %5 = arith.mulf %2, %4 : vector<8x128xf32>
    %c0_5 = arith.constant 0 : index
    %c0_6 = arith.constant 0 : index
    %6 = vector.load %arg5[%c0_5, %c0_6] : memref<1x128xf32, #tpu.memory_space<vmem>>, vector<1x128xf32>
    %7 = vector.broadcast %6 : vector<1x128xf32> to vector<8x128xf32>
    %8 = arith.mulf %5, %7 : vector<8x128xf32>
    %c0_7 = arith.constant 0 : index
    %c0_8 = arith.constant 0 : index
    %9 = vector.load %arg6[%c0_7, %c0_8] : memref<8x128xf32, #tpu.memory_space<vmem>>, vector<8x128xf32>
    tpu.vector_store %arg6[%c0_7, %c0_8], %8 {strides = array<i32>} : memref<8x128xf32, #tpu.memory_space<vmem>>, vector<8x128xf32>,
    return
  }
  func.func @transform_0(%arg0: i32, %arg1: i32) -> (i32, i32) {
    %c0_i32 = arith.constant 0 : i32
    %c0_i32_0 = arith.constant 0 : i32
    return %arg1, %c0_i32 : i32, i32
  }
  func.func @transform_1(%arg0: i32, %arg1: i32) -> (i32, i32) {
    %c0_i32 = arith.constant 0 : i32
    %c0_i32_0 = arith.constant 0 : i32
    return %c0_i32, %arg0 : i32, i32
  }
  func.func @transform_2(%arg0: i32, %arg1: i32) -> (i32, i32) {
    %c0_i32 = arith.constant 0 : i32
    %c0_i32_0 = arith.constant 0 : i32
    return %arg1, %c0_i32 : i32, i32
  }
  func.func @transform_3(%arg0: i32, %arg1: i32) -> (i32, i32) {
    %c0_i32 = arith.constant 0 : i32
    %c0_i32_0 = arith.constant 0 : i32
    return %c0_i32, %arg0 : i32, i32
  }
  func.func @transform_4(%arg0: i32, %arg1: i32) -> (i32, i32) {
    %c0_i32 = arith.constant 0 : i32
    return %arg1, %arg0 : i32, i32
  }
}

</mosaic_0001>

<llo_original>
// kernel: tpu_custom_call.1
$region0: #{tpu_custom_call.1}
  #allocation0 [shape = 'u32[]', space=smem, size = 0x4, offset = 0x4, fixed_abs, tag = 'smem constant byte address 0x4 - core index']
  #allocation1 [shape = 'u32[72,128]{1,0:T(1,128)}', space=vmem, size = 0x9000, scoped, tag = 'internal scratch']
  %s0 = inlined_call_operand.vmem [shape: f32[8,128], index: 0, kind: input, shape index: {}]
  %s1 = inlined_call_operand.hbm [shape: f32[128,128], index: 1, kind: input, shape index: {}]
  %s2 = inlined_call_operand.vmem [shape: f32[8,1], index: 2, kind: input, shape index: {}]
  %s3 = inlined_call_operand.vmem [shape: f32[1,128], index: 3, kind: input, shape index: {}]
  %s4 = inlined_call_operand.hbm [shape: f32[8,128], index: 4, kind: output, shape index: {}]
  %s5 = sld [smem:[#allocation0]]
  $region30: #{tpu_custom_call.1} parent=0
    _
  %s7 = ssub.s32 1, %s5
  %s8 = scalar_select 0, %s7, %s5
  $region1: #{tpu_custom_call.1} parent=0
    #allocation2 [shape = 'u8[65536]{0}', space=vmem, size = 0x10000, scoped, tag = 'input window, operand 1, single buffered']
    #allocation3 [shape = 's32[1]{0}', space=sflag, size = 0x4, scoped, tag = 'scoped memory for tpu_custom_call.1']
    #allocation4 [shape = 's32[1]{0}', space=sflag, size = 0x4, scoped, tag = 'scoped memory for tpu_custom_call.1']
    #allocation5 [shape = 'u8[4096]{0}', space=vmem, size = 0x1000, scoped, tag = 'output window, operand 0, single buffered']
    %9 = vsyncpa [#allocation3], 0
    %10 = vsyncpa [#allocation4], 0
    // Predicated region
    $region2: #{tpu_custom_call.1} parent=1 // pred_check
      _
    $region3: #{tpu_custom_call.1} parent=1 // pred_check_branch
      %12 = sbr.rel (0) target = $region5
    $region4: #{tpu_custom_call.1} parent=1 // pred_region
      _
    $region5: #{tpu_custom_call.1} parent=1 // pred_fallthru
      _
    // Predicated region
    $region6: #{tpu_custom_call.1} parent=1 // pred_check
      _
    $region7: #{tpu_custom_call.1} parent=1 // pred_check_branch
      %14 = sbr.rel (0) target = $region9
    $region8: #{tpu_custom_call.1} parent=1 // pred_region
      %16 = vsyncadd [#allocation3], 0
      %s17 = sshll.u32 %s1, 4
      %s18 = int_to_ptr.hbm [resolvable:$true] %s17
      %s19 = sshll.u32 [#allocation2], 4
      %s20 = int_to_ptr.vmem [resolvable:$true] %s19
      %25 = dma.hbm_to_vmem [thread:$0]  %s18, 2048, %s20, [#allocation3], 128, 128, 8
    $region9: #{tpu_custom_call.1} parent=1 // pred_fallthru
      _
    // Predicated region
    $region10: #{tpu_custom_call.1} parent=1 // pred_check
      _
    $region11: #{tpu_custom_call.1} parent=1 // pred_check_branch
      %27 = sbr.rel (0) target = $region13
    $region12: #{tpu_custom_call.1} parent=1 // pred_region
      _
    $region13: #{tpu_custom_call.1} parent=1 // pred_fallthru
      _
    // Predicated region
    $region14: #{tpu_custom_call.1} parent=1 // pred_check
      _
    $region15: #{tpu_custom_call.1} parent=1 // pred_check_branch
      %29 = sbr.rel (0) target = $region17
    $region16: #{tpu_custom_call.1} parent=1 // pred_region
      _
    $region17: #{tpu_custom_call.1} parent=1 // pred_fallthru
      _
    // Predicated region
    $region18: #{tpu_custom_call.1} parent=1 // pred_check
      _
    $region19: #{tpu_custom_call.1} parent=1 // pred_check_branch
      %31 = sbr.rel (0) target = $region21
    $region20: #{tpu_custom_call.1} parent=1 // pred_region
      %33 = dma.done [#allocation3], 2048
    $region21: #{tpu_custom_call.1} parent=1 // pred_fallthru
      _
    %v34 = vld [vmem:[%s0] sm:$0xff]
    %v35 = vld [vmem:[#allocation2] sm:$0xff]
    %v36 = vld [vmem:[#allocation2 + $0x8] sm:$0xff]
    %v37 = vld [vmem:[#allocation2 + $0x10] sm:$0xff]
    %v38 = vld [vmem:[#allocation2 + $0x18] sm:$0xff]
    %v39 = vld [vmem:[#allocation2 + $0x20] sm:$0xff]
    %v40 = vld [vmem:[#allocation2 + $0x28] sm:$0xff]
    %v41 = vld [vmem:[#allocation2 + $0x30] sm:$0xff]
    %v42 = vld [vmem:[#allocation2 + $0x38] sm:$0xff]
    %v43 = vld [vmem:[#allocation2 + $0x40] sm:$0xff]
    %v44 = vld [vmem:[#allocation2 + $0x48] sm:$0xff]
    %v45 = vld [vmem:[#allocation2 + $0x50] sm:$0xff]
    %v46 = vld [vmem:[#allocation2 + $0x58] sm:$0xff]
    %v47 = vld [vmem:[#allocation2 + $0x60] sm:$0xff]
    %v48 = vld [vmem:[#allocation2 + $0x68] sm:$0xff]
    %v49 = vld [vmem:[#allocation2 + $0x70] sm:$0xff]
    %v50 = vld [vmem:[#allocation2 + $0x78] sm:$0xff]
    %51 = vmatpush.msra.mxu0 %v50
    %52 = vmatpush.msra.mxu0 %v49
    %53 = vmatpush.msra.mxu0 %v48
    %54 = vmatpush.msra.mxu0 %v47
    %55 = vmatpush.msra.mxu0 %v46
    %56 = vmatpush.msra.mxu0 %v45
    %57 = vmatpush.msra.mxu0 %v44
    %58 = vmatpush.msra.mxu0 %v43
    %59 = vmatpush.msra.mxu0 %v42
    %60 = vmatpush.msra.mxu0 %v41
    %61 = vmatpush.msra.mxu0 %v40
    %62 = vmatpush.msra.mxu0 %v39
    %63 = vmatpush.msra.mxu0 %v38
    %64 = vmatpush.msra.mxu0 %v37
    %65 = vmatpush.msra.mxu0 %v36
    %66 = vmatpush.msra.mxu0 %v35
    %67 = vmatmul.f32.gmra.mxu0 %v34
    %v68 = vpop.f32.mrf.mxu0
    %v69 = vadd.f32 0.0, %v68
    %70 = vdwg.mxu0
    %v71 = vld [vmem:[%s2] sm:$0xff]
    %73 = vset.pattern.permute.xlu0 0
    %74 = vperm.xlu0 %73, %v71
    %v75 = vpop.permute.xlu0 %74
    %v77 = vmul.f32 %v69, %v75
    %v78 = vld [vmem:[%s3] sm:$0x1]
    %v80 = vperm.slane %v78, 0
    %v82 = vmul.f32 %v77, %v80
    %83 = vst [vmem:[#allocation5] sm:$0xff] %v82
    // Predicated region
    $region22: #{tpu_custom_call.1} parent=1 // pred_check
      _
    $region23: #{tpu_custom_call.1} parent=1 // pred_check_branch
      %85 = sbr.rel (0) target = $region25
    $region24: #{tpu_custom_call.1} parent=1 // pred_region
      %87 = vsyncadd [#allocation4], 0
      %s89 = sshll.u32 [#allocation5], 4
      %s90 = int_to_ptr.vmem [resolvable:$true] %s89
      %s91 = sshll.u32 %s4, 4
      %s92 = int_to_ptr.hbm [resolvable:$true] %s91
      %94 = dma.vmem_to_hbm [thread:$0]  %s90, 128, %s92, [#allocation4]
    $region25: #{tpu_custom_call.1} parent=1 // pred_fallthru
      _
    // Predicated region
    $region26: #{tpu_custom_call.1} parent=1 // pred_check
      _
    $region27: #{tpu_custom_call.1} parent=1 // pred_check_branch
      %96 = sbr.rel (0) target = $region29
    $region28: #{tpu_custom_call.1} parent=1 // pred_region
      %98 = dma.done [#allocation4], 128
    $region29: #{tpu_custom_call.1} parent=1 // pred_fallthru
      _
    %99 = vsyncpa [#allocation3], 1
    %100 = vsyncpa [#allocation4], 1

</llo_original>
